<compile_context>
chip_gen: v7x
topology: tpu7x:2x2x1
jax: 0.10.0
libtpu: 0.0.40
codegen_flags: <defaults>
</compile_context>

<pallas_src>
import functools

import jax
import jax.numpy as jnp
from jax.experimental import pallas as pl
from jax.experimental.pallas import tpu as pltpu

_MIB = 1024 * 1024


@functools.lru_cache(maxsize=1)
def _vmem_budget_and_limit():
    """Return (tile budget bytes, vmem_limit_bytes) for the local TPU."""
    try:
        kind = jax.devices()[0].device_kind.lower()
    except Exception:  # pragma: no cover - defensive
        kind = ""
    # v4/v5/v5e/v6e TensorCores have 128 MiB of VMEM; v7x (and anything we
    # cannot positively identify) is treated as 64 MiB per core.
    phys = 128 * _MIB if any(t in kind for t in ("v4", "v5", "v6")) else 64 * _MIB
    try:  # prefer the library's own answer when available (never raise it)
        phys = min(phys, int(pltpu.get_tpu_info().vmem_capacity_bytes))
    except Exception:
        pass
    limit = max(min(phys - 16 * _MIB, 96 * _MIB), 24 * _MIB)
    budget = max(limit - 8 * _MIB, 16 * _MIB)
    return budget, limit


def _nll_sum_kernel(rows_valid, total_steps, pack_k,
                    logp_ref, tgt_ref, out_ref, acc_ref):
    """Accumulates -sum_i logp[i, target_lane[i]] over this split's rows.

    logp_ref: (block_n, W) log-prob tile in the input dtype, W = pack_k * C
    tgt_ref:  (block_n, pack_k) int8/int32 target-lane tile (-1 == ignore)
    out_ref:  (1, 1) f32 SMEM partial sum for this split
    acc_ref:  (8, W) f32 VMEM accumulator, resident across the step axis
    """
    split = pl.program_id(0)
    step = pl.program_id(1)
    nsteps = pl.num_programs(1)

    @pl.when(step == 0)
    def _():
        acc_ref[...] = jnp.zeros_like(acc_ref)

    global_step = split * nsteps + step

    # Ghost steps (odd step counts split across two cores) are skipped
    # entirely: no compute, and their clamped DMA tile is simply ignored.
    @pl.when(global_step < total_steps)
    def _():
        logp = logp_ref[...]                                   # (bn, W)
        bn, width = logp.shape

        lane = jax.lax.broadcasted_iota(jnp.int32, (bn, width), 1)

        # Rows past the end of the (ragged) array hold undefined data; force
        # their target lane to -1 so the select below never picks them.
        row_ids = global_step * bn + jax.lax.broadcasted_iota(
            jnp.int32, (bn, 1), 0)
        row_ok = row_ids < rows_valid                          # (bn, 1)

        tgt = tgt_ref[...].astype(jnp.int32)                   # (bn, pack_k)
        mask = None
        for g in range(pack_k):                                # tiny static unroll
            tgt_g = jnp.where(row_ok, tgt[:, g:g + 1], -1)     # (bn, 1)
            hit = lane == tgt_g                                # disjoint across g
            mask = hit if mask is None else (mask | hit)

        # One wide select (select-based masking, never multiply-by-mask), then
        # fold 8-row groups into the small (8, W) f32 accumulator (VPU adds).
        picked = jnp.where(mask, logp, jnp.zeros_like(logp)).astype(jnp.float32)
        acc_ref[...] += jnp.sum(picked.reshape(bn // 8, 8, width), axis=0)

    @pl.when(step == nsteps - 1)
    def _():
        # Single small cross-lane/sublane reduction per split.
        out_ref[0, 0] = -jnp.sum(acc_ref[...])


def _pick_block_rows(rows_p, width, logp_itemsize, tgt_itemsize,
                     budget_bytes, max_rows):
    """Pick the per-step row count from an honest VMEM budget."""
    # Two pipeline buffers for the logp tile, two (lane-padded to 128 lanes)
    # buffers for the target tile, plus a generous allowance for
    # Mosaic-materialized element-wise temporaries (iota, masks, f32 picked).
    bytes_per_row = 2 * width * logp_itemsize + 2 * 128 * tgt_itemsize + 32 * width
    max_rows = max(32, (int(max_rows) // 32) * 32)
    bn = int(budget_bytes) // bytes_per_row
    bn = max(32, min(bn, max_rows))
    bn = (bn // 32) * 32
    rows_aligned = -(-rows_p // 32) * 32
    if rows_aligned <= bn:
        return rows_aligned                 # single (possibly ragged) block
    # Rebalance so every step (and hence each core of the 2-way split) carries
    # a nearly equal number of rows instead of full blocks plus one sliver.
    steps = -(-rows_p // bn)
    per_step = -(-rows_p // steps)
    return -(-per_step // 32) * 32


@functools.partial(jax.jit, static_argnames=("avg_type", "max_block_rows"))
def time_series_nll_loss(net_output, labels, avg_type="seq",
                         max_block_rows=16384):
    """Pallas implementation of TimeSeriesNLLLoss.forward.

    `max_block_rows` is a tuning/testing knob for the row-tile cap.
    """
    B, S, C = net_output.shape
    N = B * S

    # Lane packing: fold k consecutive rows into one (k*C)-wide lane row so the
    # 128-lane vreg / VMEM tile stays dense when C < 128. If N is not a
    # multiple of k, pad with <= k-1 ignored rows instead of shrinking k.
    k = max(1, min(8, 128 // C))
    pad_rows = (-N) % k
    W = k * C
    rows_p = (N + pad_rows) // k

    logp_flat = net_output.reshape(N, C)
    if pad_rows:
        # Only triggers when N % k != 0 (costs one extra copy of the input).
        logp_flat = jnp.concatenate(
            [logp_flat, jnp.zeros((pad_rows, C), net_output.dtype)], axis=0)
    logp2d = logp_flat.reshape(rows_p, W)        # free reshape, no dtype cast

    # Encode each label as the lane it selects inside its packed row. Ignored
    # (-100, the torch default ignore_index) or out-of-range labels become -1,
    # which never matches the lane iota -> contributes 0 (reduction='sum').
    # TODO(synk): torch raises on out-of-range targets; here they are ignored.
    labels_flat = labels.reshape(N).astype(jnp.int32)
    in_range = (labels_flat >= 0) & (labels_flat < C)
    lane_off = (jnp.arange(N, dtype=jnp.int32) % k) * C
    tgt_lane = jnp.where(in_range, labels_flat + lane_off, jnp.int32(-1))
    if pad_rows:
        tgt_lane = jnp.concatenate(
            [tgt_lane, jnp.full((pad_rows,), -1, jnp.int32)])
    tgt_dtype = jnp.int8 if W <= 128 else jnp.int32
    tgt2d = tgt_lane.reshape(rows_p, k).astype(tgt_dtype)

    budget, vmem_limit = _vmem_budget_and_limit()
    block_n = _pick_block_rows(rows_p, W, net_output.dtype.itemsize,
                               jnp.dtype(tgt_dtype).itemsize, budget,
                               max_block_rows)
    total_steps = -(-rows_p // block_n)

    # Leading "parallel" axis lets the two TensorCores of a v7x chip each
    # reduce ~half the steps into their own partial sum; on 1-TC chips it just
    # runs sequentially. Ghost steps (odd totals) are skipped inside the kernel.
    num_splits = 2 if total_steps >= 2 else 1
    sps = -(-total_steps // num_splits)
    last_block = total_steps - 1

    def row_block(c, i):
        # Clamp ghost steps onto a valid block so their (ignored) DMA stays in
        # bounds; their compute is skipped in-kernel.
        return (jnp.minimum(c * sps + i, last_block), 0)

    kernel = functools.partial(_nll_sum_kernel, rows_p, total_steps, k)

    partials = pl.pallas_call(
        kernel,
        out_shape=jax.ShapeDtypeStruct((num_splits, 1), jnp.float32),
        grid_spec=pltpu.PrefetchScalarGridSpec(
            num_scalar_prefetch=0,
            grid=(num_splits, sps),
            in_specs=[
                pl.BlockSpec((block_n, W), row_block),
                pl.BlockSpec((block_n, k), row_block),
            ],
            out_specs=pl.BlockSpec((1, 1), lambda c, i: (c, 0),
                                   memory_space=pltpu.SMEM),
            scratch_shapes=[pltpu.VMEM((8, W), jnp.float32)],
        ),
        compiler_params=pltpu.CompilerParams(
            dimension_semantics=("parallel", "arbitrary"),
            vmem_limit_bytes=int(vmem_limit),
        ),
    )(logp2d, tgt2d)

    loss_sum = jnp.sum(partials)

    # Normalization glue (cheap scalar math, kept outside the kernel).
    if avg_type == "seq":
        loss = loss_sum / jnp.float32(B)
    elif avg_type == "time":
        # Mirrors torch exactly (inherited behavior): sign() over the raw
        # labels, so -100 entries contribute -1 and class-0 labels contribute 0.
        loss = loss_sum / jnp.sum(jnp.sign(labels.reshape(-1))).astype(jnp.float32)
    elif avg_type is None:
        loss = loss_sum
    else:
        raise ValueError("Unknown avg type")
    return loss


def _reference_loss(net_output, labels, avg_type="seq"):
    """Pure-JAX reference mirroring torch.nn.NLLLoss(reduction='sum')."""
    B, S, C = net_output.shape
    logp = net_output.reshape(-1, C).astype(jnp.float32)
    tgt = labels.reshape(-1).astype(jnp.int32)
    safe = jnp.clip(tgt, 0, C - 1)
    picked = jnp.take_along_axis(logp, safe[:, None], axis=1)[:, 0]
    valid = ((tgt >= 0) & (tgt < C)).astype(jnp.float32)   # ignore_index handling
    loss = -jnp.sum(picked * valid)
    if avg_type == "seq":
        loss = loss / jnp.float32(B)
    elif avg_type == "time":
        loss = loss / jnp.sum(jnp.sign(tgt)).astype(jnp.float32)
    return loss


if __name__ == "__main__":
    key = jax.random.PRNGKey(0)
    k1, k2, k3, k4, k5, k6 = jax.random.split(key, 6)

    # Case 1: small shapes implied by the module (batch, seq_len, num_classes).
    B, S, C = 2, 8, 32
    logits = jax.random.normal(k1, (B, S, C), dtype=jnp.float32)
    net_output = jax.nn.log_softmax(logits, axis=-1)        # log-probabilities
    labels = jax.random.randint(k2, (B, S), 0, C, dtype=jnp.int32)
    for avg in ("seq", "time", None):
        out = jax.block_until_ready(
            time_series_nll_loss(net_output, labels, avg_type=avg))
        ref = _reference_loss(net_output, labels, avg_type=avg)
        assert jnp.allclose(out, ref, rtol=1e-5, atol=1e-5), (avg, out, ref)

    # Case 2: bf16 input streamed in its own dtype + ignore_index entries.
    B2, S2, C2 = 4, 1100, 32
    logits2 = jax.random.normal(k3, (B2, S2, C2), dtype=jnp.float32)
    net_output2 = jax.nn.log_softmax(logits2, axis=-1).astype(jnp.bfloat16)
    labels2 = jax.random.randint(k4, (B2, S2), 0, C2, dtype=jnp.int32)
    labels2 = jnp.where((jnp.arange(B2 * S2).reshape(B2, S2) % 97) == 0,
                        jnp.int32(-100), labels2)
    out2 = jax.block_until_ready(
        time_series_nll_loss(net_output2, labels2, avg_type="seq"))
    ref2 = _reference_loss(net_output2, labels2, avg_type="seq")
    assert jnp.allclose(out2, ref2, rtol=1e-4, atol=1e-2), (out2, ref2)

    # Case 2b: same data with a tiny tile cap to exercise the multi-step grid,
    # the 2-way core split, ragged last block and the ghost-step skip path.
    out2b = jax.block_until_ready(
        time_series_nll_loss(net_output2, labels2, avg_type="seq",
                             max_block_rows=256))
    assert jnp.allclose(out2b, ref2, rtol=1e-4, atol=1e-2), (out2b, ref2)

    # Case 3: N not divisible by the pack factor (exercises the pad path).
    B3, S3, C3 = 3, 7, 32
    logits3 = jax.random.normal(k5, (B3, S3, C3), dtype=jnp.float32)
    net_output3 = jax.nn.log_softmax(logits3, axis=-1)
    labels3 = jax.random.randint(k6, (B3, S3), 0, C3, dtype=jnp.int32)
    out3 = jax.block_until_ready(
        time_series_nll_loss(net_output3, labels3, avg_type="seq"))
    ref3 = _reference_loss(net_output3, labels3, avg_type="seq")
    assert jnp.allclose(out3, ref3, rtol=1e-5, atol=1e-5), (out3, ref3)

    # Case 4: C > 128 (no lane packing, int32 targets, W not a multiple of 128).
    B4, S4, C4 = 2, 16, 160
    logits4 = jax.random.normal(k1, (B4, S4, C4), dtype=jnp.float32)
    net_output4 = jax.nn.log_softmax(logits4, axis=-1)
    labels4 = jax.random.randint(k2, (B4, S4), 0, C4, dtype=jnp.int32)
    out4 = jax.block_until_ready(
        time_series_nll_loss(net_output4, labels4, avg_type="seq"))
    ref4 = _reference_loss(net_output4, labels4, avg_type="seq")
    assert jnp.allclose(out4, ref4, rtol=1e-5, atol=1e-5), (out4, ref4)

    print("KERNEL_OK")
</pallas_src>

<mosaic_0001>
module attributes {stable_mosaic.version = 11 : i64} {
  func.func @_nll_sum_kernel(%arg0: i32, %arg1: i32, %arg2: memref<32x128xf32, #tpu.memory_space<vmem>>, %arg3: memref<32x4xi8, #tpu.memory_space<vmem>>, %arg4: memref<1x1xf32, #tpu.memory_space<smem>>, %arg5: memref<8x128xf32, #tpu.memory_space<vmem>>) attributes {dimension_semantics = [#tpu.dimension_semantics<parallel>, #tpu.dimension_semantics<arbitrary>], iteration_bounds = array<i64: 1, 1>, scalar_prefetch = 0 : i64, scratch_operands = 1 : i64, tpu.core_type = #tpu.core_type<tc>, window_params = [{transform_indices = @transform_0, window_bounds = array<i64: 32, 128>}, {transform_indices = @transform_1, window_bounds = array<i64: 32, 4>}, {transform_indices = @transform_2, window_bounds = array<i64: 1, 1>}]} {
    %c0_i32 = arith.constant 0 : i32
    %0 = arith.cmpi eq, %arg1, %c0_i32 : i32
    %1 = arith.extui %0 : i1 to i32
    %c0_i32_0 = arith.constant 0 : i32
    %2 = arith.cmpi ne, %1, %c0_i32_0 : i32
    scf.if %2 {
      %cst = arith.constant 0.000000e+00 : f32
      %11 = vector.broadcast %cst : f32 to vector<8x128xf32>
      %c0 = arith.constant 0 : index
      %c0_5 = arith.constant 0 : index
      %12 = vector.load %arg5[%c0, %c0_5] : memref<8x128xf32, #tpu.memory_space<vmem>>, vector<8x128xf32>
      tpu.vector_store %arg5[%c0, %c0_5], %11 {strides = array<i32>} : memref<8x128xf32, #tpu.memory_space<vmem>>, vector<8x128xf32>,
    } else {
    }
    %c1_i32 = arith.constant 1 : i32
    %3 = arith.muli %arg0, %c1_i32 : i32
    %4 = arith.addi %3, %arg1 : i32
    %c1_i32_1 = arith.constant 1 : i32
    %5 = arith.cmpi slt, %4, %c1_i32_1 : i32
    %6 = arith.extui %5 : i1 to i32
    %c0_i32_2 = arith.constant 0 : i32
    %7 = arith.cmpi ne, %6, %c0_i32_2 : i32
    scf.if %7 {
      %c0 = arith.constant 0 : index
      %c0_5 = arith.constant 0 : index
      %11 = vector.load %arg2[%c0, %c0_5] : memref<32x128xf32, #tpu.memory_space<vmem>>, vector<32x128xf32>
      %12 = tpu.iota {dimensions = array<i32: 1>} : vector<32x128xi32>
      %c32_i32 = arith.constant 32 : i32
      %13 = arith.muli %4, %c32_i32 : i32
      %14 = tpu.iota {dimensions = array<i32: 0>} : vector<32x1xi32>
      %15 = vector.broadcast %13 : i32 to vector<32x1xi32>
      %16 = arith.addi %15, %14 : vector<32x1xi32>
      %c4_i32 = arith.constant 4 : i32
      %17 = vector.broadcast %c4_i32 : i32 to vector<32x1xi32>
      %18 = arith.cmpi slt, %16, %17 : vector<32x1xi32>
      %c0_6 = arith.constant 0 : index
      %c0_7 = arith.constant 0 : index
      %19 = vector.load %arg3[%c0_6, %c0_7] : memref<32x4xi8, #tpu.memory_space<vmem>>, vector<32x4xi8>
      %20 = arith.extsi %19 : vector<32x4xi8> to vector<32x4xi32>
      %21 = vector.extract_strided_slice %20 {offsets = [0, 0], sizes = [32, 1], strides = [1, 1]} : vector<32x4xi32> to vector<32x1xi32>
      %c-1_i32 = arith.constant -1 : i32
      %22 = vector.broadcast %c-1_i32 : i32 to vector<32x1xi32>
      %23 = arith.select %18, %21, %22 : vector<32x1xi1>, vector<32x1xi32>
      %24 = vector.broadcast %23 : vector<32x1xi32> to vector<32x128xi32>
      %25 = arith.cmpi eq, %12, %24 : vector<32x128xi32>
      %26 = vector.extract_strided_slice %20 {offsets = [0, 1], sizes = [32, 1], strides = [1, 1]} : vector<32x4xi32> to vector<32x1xi32>
      %c-1_i32_8 = arith.constant -1 : i32
      %27 = vector.broadcast %c-1_i32_8 : i32 to vector<32x1xi32>
      %28 = arith.select %18, %26, %27 : vector<32x1xi1>, vector<32x1xi32>
      %29 = vector.broadcast %28 : vector<32x1xi32> to vector<32x128xi32>
      %30 = arith.cmpi eq, %12, %29 : vector<32x128xi32>
      %31 = arith.ori %25, %30 : vector<32x128xi1>
      %32 = vector.extract_strided_slice %20 {offsets = [0, 2], sizes = [32, 1], strides = [1, 1]} : vector<32x4xi32> to vector<32x1xi32>
      %c-1_i32_9 = arith.constant -1 : i32
      %33 = vector.broadcast %c-1_i32_9 : i32 to vector<32x1xi32>
      %34 = arith.select %18, %32, %33 : vector<32x1xi1>, vector<32x1xi32>
      %35 = vector.broadcast %34 : vector<32x1xi32> to vector<32x128xi32>
      %36 = arith.cmpi eq, %12, %35 : vector<32x128xi32>
      %37 = arith.ori %31, %36 : vector<32x128xi1>
      %38 = vector.extract_strided_slice %20 {offsets = [0, 3], sizes = [32, 1], strides = [1, 1]} : vector<32x4xi32> to vector<32x1xi32>
      %c-1_i32_10 = arith.constant -1 : i32
      %39 = vector.broadcast %c-1_i32_10 : i32 to vector<32x1xi32>
      %40 = arith.select %18, %38, %39 : vector<32x1xi1>, vector<32x1xi32>
      %41 = vector.broadcast %40 : vector<32x1xi32> to vector<32x128xi32>
      %42 = arith.cmpi eq, %12, %41 : vector<32x128xi32>
      %43 = arith.ori %37, %42 : vector<32x128xi1>
      %cst = arith.constant 0.000000e+00 : f32
      %44 = vector.broadcast %cst : f32 to vector<32x128xf32>
      %45 = arith.select %43, %11, %44 : vector<32x128xi1>, vector<32x128xf32>
      %c0_11 = arith.constant 0 : index
      %c0_12 = arith.constant 0 : index
      %46 = vector.load %arg5[%c0_11, %c0_12] : memref<8x128xf32, #tpu.memory_space<vmem>>, vector<8x128xf32>
      %47 = vector.shape_cast %45 : vector<32x128xf32> to vector<4x8x128xf32>
      %cst_13 = arith.constant dense<0.000000e+00> : vector<8x128xf32>
      %48 = vector.multi_reduction <add>, %47, %cst_13 [0] : vector<4x8x128xf32> to vector<8x128xf32>
      %49 = arith.addf %46, %48 : vector<8x128xf32>
      %c0_14 = arith.constant 0 : index
      %c0_15 = arith.constant 0 : index
      %50 = vector.load %arg5[%c0_14, %c0_15] : memref<8x128xf32, #tpu.memory_space<vmem>>, vector<8x128xf32>
      tpu.vector_store %arg5[%c0_14, %c0_15], %49 {strides = array<i32>} : memref<8x128xf32, #tpu.memory_space<vmem>>, vector<8x128xf32>,
    } else {
    }
    %c0_i32_3 = arith.constant 0 : i32
    %8 = arith.cmpi eq, %arg1, %c0_i32_3 : i32
    %9 = arith.extui %8 : i1 to i32
    %c0_i32_4 = arith.constant 0 : i32
    %10 = arith.cmpi ne, %9, %c0_i32_4 : i32
    scf.if %10 {
      %c0 = arith.constant 0 : index
      %c0_5 = arith.constant 0 : index
      %11 = vector.load %arg5[%c0, %c0_5] : memref<8x128xf32, #tpu.memory_space<vmem>>, vector<8x128xf32>
      %12 = vector.shape_cast %11 : vector<8x128xf32> to vector<1x8x128xf32>
      %cst = arith.constant dense<0.000000e+00> : vector<1xf32>
      %13 = vector.multi_reduction <add>, %12, %cst [1, 2] : vector<1x8x128xf32> to vector<1xf32>
      %14 = vector.shape_cast %13 : vector<1xf32> to vector<1x1x1xf32>
      %15 = vector.extract %14[0, 0, 0] : f32 from vector<1x1x1xf32>
      %cst_6 = arith.constant 0.000000e+00 : f32
      %16 = arith.subf %cst_6, %15 : f32
      %c0_7 = arith.constant 0 : index
      %c0_8 = arith.constant 0 : index
      %17 = memref.load %arg4[%c0_7, %c0_8] : memref<1x1xf32, #tpu.memory_space<smem>>
      memref.store %16, %arg4[%c0_7, %c0_8] : memref<1x1xf32, #tpu.memory_space<smem>>
    } else {
    }
    return
  }
  func.func @transform_0(%arg0: i32, %arg1: i32) -> (i32, i32) {
    %c1_i32 = arith.constant 1 : i32
    %0 = arith.muli %arg0, %c1_i32 : i32
    %1 = arith.addi %0, %arg1 : i32
    %c0_i32 = arith.constant 0 : i32
    %2 = arith.minsi %1, %c0_i32 : i32
    %c0_i32_0 = arith.constant 0 : i32
    %c0_i32_1 = arith.constant 0 : i32
    return %2, %c0_i32_0 : i32, i32
  }
  func.func @transform_1(%arg0: i32, %arg1: i32) -> (i32, i32) {
    %c1_i32 = arith.constant 1 : i32
    %0 = arith.muli %arg0, %c1_i32 : i32
    %1 = arith.addi %0, %arg1 : i32
    %c0_i32 = arith.constant 0 : i32
    %2 = arith.minsi %1, %c0_i32 : i32
    %c0_i32_0 = arith.constant 0 : i32
    %c0_i32_1 = arith.constant 0 : i32
    return %2, %c0_i32_0 : i32, i32
  }
  func.func @transform_2(%arg0: i32, %arg1: i32) -> (i32, i32) {
    %c0_i32 = arith.constant 0 : i32
    %c0_i32_0 = arith.constant 0 : i32
    return %arg0, %c0_i32 : i32, i32
  }
}

</mosaic_0001>

<llo_original>
// kernel: time_series_nll_loss.1
$region0: #{time_series_nll_loss.1}
  #allocation0 [shape = 'u32[]', space=smem, size = 0x4, offset = 0x4, fixed_abs, tag = 'smem constant byte address 0x4 - core index']
  #allocation1 [shape = 'u32[144,128]{1,0:T(1,128)}', space=vmem, size = 0x12000, scoped, tag = 'internal scratch']
  #allocation2 [shape = 'f32[8,128]{1,0:T(8,128)}', space=vmem, size = 0x1000, scoped, tag = 'scratch operand']
  %s0 = inlined_call_operand.vmem [shape: f32[4,128], index: 0, kind: input, shape index: {}]
  %s1 = inlined_call_operand.vmem [shape: s8[4,4], index: 1, kind: input, shape index: {}]
  %s2 = inlined_call_operand.hbm [shape: f32[1,1], index: 2, kind: output, shape index: {}]
  %s3 = sld [smem:[#allocation0]]
  $region30: #{time_series_nll_loss.1} parent=0
    _
  %s5 = ssub.s32 1, %s3
  %s6 = scalar_select 0, %s5, %s3
  $region1: #{time_series_nll_loss.1} parent=0
    #allocation3 [shape = 'u8[512]{0}', space=smem, size = 0x200, scoped, tag = 'output window, operand 0, single buffered']
    #allocation4 [shape = 's32[1]{0}', space=sflag, size = 0x4, scoped, tag = 'scoped memory for time_series_nll_loss.1']
    %7 = vsyncpa [#allocation4], 0
    // Predicated region
    $region2: #{time_series_nll_loss.1} parent=1 // pred_check
      _
    $region3: #{time_series_nll_loss.1} parent=1 // pred_check_branch
      %9 = sbr.rel (0) target = $region5
    $region4: #{time_series_nll_loss.1} parent=1 // pred_region
      %s10 = sadd.s32 0, 0
      %p11 = scmp.lt.s32.totalorder %s10, 0
      %s12 = scalar_select %p11, %s10, 0
      %s13 = smul.u32 8, %s12
      %s14 = ssub.s32 1, %s13
      %s15 = smul.u32 64, %s14
      %p16 = scmp.lt.s32.totalorder %s13, 0
      %s17 = scalar_select %p16, %s13, 0
      %s18 = smul.addr %s17, 4
      %s19 = scalar_lea.vmem %s0, %s18
      %s20 = sadd.s32 0, 0
      %p21 = scmp.lt.s32.totalorder %s20, 0
      %s22 = scalar_select %p21, %s20, 0
      %s23 = smul.u32 8, %s22
      %s24 = ssub.s32 1, %s23
      %s25 = smul.u32 64, %s24
    $region5: #{time_series_nll_loss.1} parent=1 // pred_fallthru
      _
    // Predicated region
    $region6: #{time_series_nll_loss.1} parent=1 // pred_check
      _
    $region7: #{time_series_nll_loss.1} parent=1 // pred_check_branch
      %27 = sbr.rel (0) target = $region9
    $region8: #{time_series_nll_loss.1} parent=1 // pred_region
      %s28 = sadd.s32 0, 0
      %p29 = scmp.lt.s32.totalorder %s28, 0
      %s30 = scalar_select %p29, %s28, 0
      %s31 = smul.u32 8, %s30
      %s32 = ssub.s32 1, %s31
      %s33 = smul.u32 16, %s32
      %p34 = scmp.lt.s32.totalorder %s31, 0
      %s35 = scalar_select %p34, %s31, 0
      %s36 = scalar_lea.vmem %s1, %s35
      %s37 = sadd.s32 0, 0
      %p38 = scmp.lt.s32.totalorder %s37, 0
      %s39 = scalar_select %p38, %s37, 0
      %s40 = smul.u32 8, %s39
      %s41 = ssub.s32 1, %s40
      %s42 = smul.u32 16, %s41
    $region9: #{time_series_nll_loss.1} parent=1 // pred_fallthru
      _
    %s43 = sadd.s32 0, 0
    %p44 = scmp.lt.s32.totalorder %s43, 0
    %s45 = scalar_select %p44, %s43, 0
    %s46 = smul.u32 8, %s45
    %s47 = ssub.s32 1, %s46
    %s48 = smul.u32 64, %s47
    %p49 = scmp.lt.s32.totalorder %s46, 0
    %s50 = scalar_select %p49, %s46, 0
    %s51 = smul.addr %s50, 4
    %s52 = scalar_lea.vmem %s0, %s51
    %s53 = sadd.s32 0, 0
    %p54 = scmp.lt.s32.totalorder %s53, 0
    %s55 = scalar_select %p54, %s53, 0
    %s56 = smul.u32 8, %s55
    %s57 = ssub.s32 1, %s56
    %s58 = smul.u32 16, %s57
    %p59 = scmp.lt.s32.totalorder %s56, 0
    %s60 = scalar_select %p59, %s56, 0
    %s61 = scalar_lea.vmem %s1, %s60
    %s62 = sadd.s32 0, 0
    %p63 = scmp.lt.s32.totalorder %s62, 0
    %s64 = scalar_select %p63, %s62, 0
    %s65 = smul.u32 8, %s64
    %s66 = ssub.s32 1, %s65
    %s67 = smul.u32 64, %s66
    %p68 = scmp.lt.s32.totalorder %s65, 0
    %s69 = scalar_select %p68, %s65, 0
    %s70 = smul.addr %s69, 4
    %s71 = scalar_lea.vmem %s0, %s70
    %s72 = sadd.s32 0, 0
    %p73 = scmp.lt.s32.totalorder %s72, 0
    %s74 = scalar_select %p73, %s72, 0
    %s75 = smul.u32 8, %s74
    %s76 = ssub.s32 1, %s75
    %s77 = smul.u32 64, %s76
    %s78 = sadd.s32 0, 0
    %p79 = scmp.lt.s32.totalorder %s78, 0
    %s80 = scalar_select %p79, %s78, 0
    %s81 = smul.u32 8, %s80
    %s82 = ssub.s32 1, %s81
    %s83 = smul.u32 16, %s82
    %p84 = scmp.lt.s32.totalorder %s81, 0
    %s85 = scalar_select %p84, %s81, 0
    %s86 = scalar_lea.vmem %s1, %s85
    %s87 = sadd.s32 0, 0
    %p88 = scmp.lt.s32.totalorder %s87, 0
    %s89 = scalar_select %p88, %s87, 0
    %s90 = smul.u32 8, %s89
    %s91 = ssub.s32 1, %s90
    %s92 = smul.u32 16, %s91
    %p93 = scmp.eq.s32.totalorder 0, 0
    // Predicated region
    $region10: #{time_series_nll_loss.1} parent=1 // pred_check
      %p94 = pneg %p93
    $region11: #{time_series_nll_loss.1} parent=1 // pred_check_branch
      %96 = sbr.rel (%p94) target = $region13
    $region12: #{time_series_nll_loss.1} parent=1 // pred_region
      %97 = vst [vmem:[#allocation2] sm:$0xff] 0.0
    $region13: #{time_series_nll_loss.1} parent=1 // pred_fallthru
      _
    %s98 = sadd.s32 0, 0
    %p99 = scmp.lt.s32.totalorder %s98, 1
    // Predicated region
    $region14: #{time_series_nll_loss.1} parent=1 // pred_check
      %p100 = pneg %p99
    $region15: #{time_series_nll_loss.1} parent=1 // pred_check_branch
      %102 = sbr.rel (%p100) target = $region17
    $region16: #{time_series_nll_loss.1} parent=1 // pred_region
      %v103 = vld [vmem:[%s71] sm:$0xff]
      %v104 = vld [vmem:[%s71 + $0x8] sm:$0xff]
      %v105 = vld [vmem:[%s71 + $0x10] sm:$0xff]
      %v106 = vld [vmem:[%s71 + $0x18] sm:$0xff]
      %v107 = vlaneseq
      %v108 = vand.u32 %v107, 127
      %s109 = smul.u32 %s98, 32
      %v110 = vlaneseq
      %v111 = vshrl.u32 %v110, 7
      %v112 = vadd.s32 %v111, 8
      %v113 = vadd.s32 %v111, 16
      %v114 = vadd.s32 %v111, 24
      %v115 = vstv %s109
      %v116 = vadd.s32 %v115, %v111
      %v117 = vadd.s32 %v115, %v112
      %v118 = vadd.s32 %v115, %v113
      %v119 = vadd.s32 %v115, %v114
      %vm120 = vcmp.lt.s32.totalorder %v116, 4
      %vm121 = vcmp.lt.s32.totalorder %v117, 4
      %vm122 = vcmp.lt.s32.totalorder %v118, 4
      %vm123 = vcmp.lt.s32.totalorder %v119, 4
      %v124 = vld [vmem:[%s86] sm:$0x1]
      %v125 = vld [vmem:[%s86 + $0x1] sm:$0x1]
      %v126 = vld [vmem:[%s86 + $0x2] sm:$0x1]
      %v127 = vld [vmem:[%s86 + $0x3] sm:$0x1]
      %v128 = vld [vmem:[%s86 + $0x4] sm:$0x1]
      %v129 = vld [vmem:[%s86 + $0x5] sm:$0x1]
      %v130 = vld [vmem:[%s86 + $0x6] sm:$0x1]
      %v131 = vld [vmem:[%s86 + $0x7] sm:$0x1]
      %v132 = vunpack.c.0.s8 %v124
      %v133 = vunpack.c.0.s8 %v125
      %v134 = vunpack.c.0.s8 %v126
      %v135 = vunpack.c.0.s8 %v127
      %v136 = vunpack.c.0.s8 %v128
      %v137 = vunpack.c.0.s8 %v129
      %v138 = vunpack.c.0.s8 %v130
      %v139 = vunpack.c.0.s8 %v131
      %v140 = vcombine.low %v132, %v133
      %v141 = vcombine.low %v134, %v135
      %v142 = vcombine.low %v136, %v137
      %v143 = vcombine.low %v138, %v139
      %v144 = vsel %vm120, %v140, 4294967295
      %v145 = vsel %vm121, %v141, 4294967295
      %v146 = vsel %vm122, %v142, 4294967295
      %v147 = vsel %vm123, %v143, 4294967295
      %148 = vset.pattern.permute.xlu0 0
      %149 = vperm.xlu0 %148, %v144
      %v150 = vpop.permute.xlu0 %149
      %151 = vset.pattern.permute.xlu0 0
      %152 = vperm.xlu0 %151, %v145
      %v153 = vpop.permute.xlu0 %152
      %154 = vset.pattern.permute.xlu0 0
      %155 = vperm.xlu0 %154, %v146
      %v156 = vpop.permute.xlu0 %155
      %157 = vset.pattern.permute.xlu0 0
      %158 = vperm.xlu0 %157, %v147
      %v159 = vpop.permute.xlu0 %158
      %vm160 = vcmp.eq.s32.totalorder %v108, %v150
      %vm161 = vcmp.eq.s32.totalorder %v108, %v153
      %vm162 = vcmp.eq.s32.totalorder %v108, %v156
      %vm163 = vcmp.eq.s32.totalorder %v108, %v159
      %164 = vrot.lane.b32.xlu0 %v140, 127
      %v165 = vpop.permute.xlu0 %164
      %166 = vrot.lane.b32.xlu0 %v141, 127
      %v167 = vpop.permute.xlu0 %166
      %168 = vrot.lane.b32.xlu0 %v142, 127
      %v169 = vpop.permute.xlu0 %168
      %170 = vrot.lane.b32.xlu0 %v143, 127
      %v171 = vpop.permute.xlu0 %170
      %v172 = vsel %vm120, %v165, 4294967295
      %v173 = vsel %vm121, %v167, 4294967295
      %v174 = vsel %vm122, %v169, 4294967295
      %v175 = vsel %vm123, %v171, 4294967295
      %176 = vset.pattern.permute.xlu0 0
      %177 = vperm.xlu0 %176, %v172
      %v178 = vpop.permute.xlu0 %177
      %179 = vset.pattern.permute.xlu0 0
      %180 = vperm.xlu0 %179, %v173
      %v181 = vpop.permute.xlu0 %180
      %182 = vset.pattern.permute.xlu0 0
      %183 = vperm.xlu0 %182, %v174
      %v184 = vpop.permute.xlu0 %183
      %185 = vset.pattern.permute.xlu0 0
      %186 = vperm.xlu0 %185, %v175
      %v187 = vpop.permute.xlu0 %186
      %vm188 = vcmp.eq.s32.totalorder %v108, %v178
      %vm189 = vcmp.eq.s32.totalorder %v108, %v181
      %vm190 = vcmp.eq.s32.totalorder %v108, %v184
      %vm191 = vcmp.eq.s32.totalorder %v108, %v187
      %vm192 = vmor %vm160, %vm188
      %vm193 = vmor %vm161, %vm189
      %vm194 = vmor %vm162, %vm190
      %vm195 = vmor %vm163, %vm191
      %196 = vrot.lane.b32.xlu0 %v140, 126
      %v197 = vpop.permute.xlu0 %196
      %198 = vrot.lane.b32.xlu0 %v141, 126
      %v199 = vpop.permute.xlu0 %198
      %200 = vrot.lane.b32.xlu0 %v142, 126
      %v201 = vpop.permute.xlu0 %200
      %202 = vrot.lane.b32.xlu0 %v143, 126
      %v203 = vpop.permute.xlu0 %202
      %v204 = vsel %vm120, %v197, 4294967295
      %v205 = vsel %vm121, %v199, 4294967295
      %v206 = vsel %vm122, %v201, 4294967295
      %v207 = vsel %vm123, %v203, 4294967295
      %208 = vset.pattern.permute.xlu0 0
      %209 = vperm.xlu0 %208, %v204
      %v210 = vpop.permute.xlu0 %209
      %211 = vset.pattern.permute.xlu0 0
      %212 = vperm.xlu0 %211, %v205
      %v213 = vpop.permute.xlu0 %212
      %214 = vset.pattern.permute.xlu0 0
      %215 = vperm.xlu0 %214, %v206
      %v216 = vpop.permute.xlu0 %215
      %217 = vset.pattern.permute.xlu0 0
      %218 = vperm.xlu0 %217, %v207
      %v219 = vpop.permute.xlu0 %218
      %vm220 = vcmp.eq.s32.totalorder %v108, %v210
      %vm221 = vcmp.eq.s32.totalorder %v108, %v213
      %vm222 = vcmp.eq.s32.totalorder %v108, %v216
      %vm223 = vcmp.eq.s32.totalorder %v108, %v219
      %vm224 = vmor %vm192, %vm220
      %vm225 = vmor %vm193, %vm221
      %vm226 = vmor %vm194, %vm222
      %vm227 = vmor %vm195, %vm223
      %228 = vrot.lane.b32.xlu0 %v140, 125
      %v229 = vpop.permute.xlu0 %228
      %230 = vrot.lane.b32.xlu0 %v141, 125
      %v231 = vpop.permute.xlu0 %230
      %232 = vrot.lane.b32.xlu0 %v142, 125
      %v233 = vpop.permute.xlu0 %232
      %234 = vrot.lane.b32.xlu0 %v143, 125
      %v235 = vpop.permute.xlu0 %234
      %v236 = vsel %vm120, %v229, 4294967295
      %v237 = vsel %vm121, %v231, 4294967295
      %v238 = vsel %vm122, %v233, 4294967295
      %v239 = vsel %vm123, %v235, 4294967295
      %240 = vset.pattern.permute.xlu0 0
      %241 = vperm.xlu0 %240, %v236
      %v242 = vpop.permute.xlu0 %241
      %243 = vset.pattern.permute.xlu0 0
      %244 = vperm.xlu0 %243, %v237
      %v245 = vpop.permute.xlu0 %244
      %246 = vset.pattern.permute.xlu0 0
      %247 = vperm.xlu0 %246, %v238
      %v248 = vpop.permute.xlu0 %247
      %249 = vset.pattern.permute.xlu0 0
      %250 = vperm.xlu0 %249, %v239
      %v251 = vpop.permute.xlu0 %250
      %vm252 = vcmp.eq.s32.totalorder %v108, %v242
      %vm253 = vcmp.eq.s32.totalorder %v108, %v245
      %vm254 = vcmp.eq.s32.totalorder %v108, %v248
      %vm255 = vcmp.eq.s32.totalorder %v108, %v251
      %vm256 = vmor %vm224, %vm252
      %vm257 = vmor %vm225, %vm253
      %vm258 = vmor %vm226, %vm254
      %vm259 = vmor %vm227, %vm255
      %v260 = vsel %vm256, %v103, 0.0
      %v261 = vsel %vm257, %v104, 0.0
      %v262 = vsel %vm258, %v105, 0.0
      %v263 = vsel %vm259, %v106, 0.0
      %v264 = vld [vmem:[#allocation2] sm:$0xff]
      %v265 = vadd.f32 %v260, %v261
      %v266 = vadd.f32 %v265, %v262
      %v267 = vadd.f32 %v266, %v263
      %v268 = vadd.f32 %v264, %v267
      %269 = vst [vmem:[#allocation2] sm:$0xff] %v268
    $region17: #{time_series_nll_loss.1} parent=1 // pred_fallthru
      _
    // Predicated region
    $region18: #{time_series_nll_loss.1} parent=1 // pred_check
      %p270 = pneg %p93
    $region19: #{time_series_nll_loss.1} parent=1 // pred_check_branch
      %272 = sbr.rel (%p270) target = $region21
    $region20: #{time_series_nll_loss.1} parent=1 // pred_region
      %v273 = vld [vmem:[#allocation2] sm:$0xff]
      %274 = vadd.xlane.f32.xlu0 %v273
      %v275 = vpop.xlane.xlu0 %274
      %v276 = vrot.slane %v275, 4
      %v277 = vadd.f32 %v275, %v276
      %v278 = vrot.slane %v277, 2
      %v279 = vadd.f32 %v277, %v278
      %v280 = vrot.slane %v279, 1
      %v281 = vadd.f32 %v279, %v280
      %s282 = vtos %v281
      %s283 = ssub.f32 0.0, %s282
      %s284 = scalar_lea.smem [#allocation3], 0
      %285 = sst [smem:[%s284]] %s283
    $region21: #{time_series_nll_loss.1} parent=1 // pred_fallthru
      _
    // Predicated region
    $region22: #{time_series_nll_loss.1} parent=1 // pred_check
      _
    $region23: #{time_series_nll_loss.1} parent=1 // pred_check_branch
      %287 = sbr.rel (0) target = $region25
    $region24: #{time_series_nll_loss.1} parent=1 // pred_region
      %s289 = ssub.s32 16, 16
      %290 = vsyncadd [#allocation4], %s289
      %293 = dma.smem_to_hbm [#allocation3], 16, %s2, [#allocation4]
    $region25: #{time_series_nll_loss.1} parent=1 // pred_fallthru
      _
    // Predicated region
    $region26: #{time_series_nll_loss.1} parent=1 // pred_check
      _
    $region27: #{time_series_nll_loss.1} parent=1 // pred_check_branch
      %295 = sbr.rel (0) target = $region29
    $region28: #{time_series_nll_loss.1} parent=1 // pred_region
      %296 = dma.done [#allocation4], 16
    $region29: #{time_series_nll_loss.1} parent=1 // pred_fallthru
      _
    %297 = sfence
    %298 = vsyncpa [#allocation4], 1

</llo_original>
